<compile_context>
chip_gen: v7x
topology: tpu7x:2x2x1
jax: 0.10.0
libtpu: 0.0.40
codegen_flags: <defaults>
</compile_context>

<pallas_src>
import functools

import jax
import jax.numpy as jnp
from jax import lax
from jax.experimental import pallas as pl
from jax.experimental.pallas import tpu as pltpu


def _round_up(v, m):
    return ((v + m - 1) // m) * m


def _similarity_kernel(x_ref, y_ref, o_ref, acc_ref, sx_ref, sy_ref, *,
                       inv_temp, eps):
    # x_ref: (tm, tk) chunk of x rows; y_ref: (tn, tk) chunk of y rows.
    k = pl.program_id(2)

    @pl.when(k == 0)
    def _():
        acc_ref[...] = jnp.zeros_like(acc_ref)
        sx_ref[...] = jnp.zeros_like(sx_ref)
        sy_ref[...] = jnp.zeros_like(sy_ref)

    x = x_ref[...]
    y = y_ref[...]

    # Partial row sums-of-squares in f32 (VPU mults + XLU reduce).
    xf = x.astype(jnp.float32)
    yf = y.astype(jnp.float32)
    sx_ref[...] += jnp.sum(xf * xf, axis=-1, keepdims=True)   # (tm, 1)
    sy_ref[...] += jnp.sum(yf * yf, axis=-1, keepdims=True)   # (tn, 1)

    # MXU matmul in storage dtype, f32 accumulation; contract last dims of
    # both operands (no y transpose inside the kernel).
    acc_ref[...] += lax.dot_general(x, y, (((1,), (1,)), ((), ())),
                                    preferred_element_type=jnp.float32)

    @pl.when(k == pl.num_programs(2) - 1)
    def _():
        # NOTE: clamps each row norm at eps (torch's CosineSimilarity clamps
        # the *product* of norms); only differs for near-zero vectors.
        inv_x = lax.rsqrt(jnp.maximum(sx_ref[...], eps * eps)) * inv_temp  # (tm,1)
        inv_y = lax.rsqrt(jnp.maximum(sy_ref[...], eps * eps))            # (tn,1)
        o_ref[...] = ((acc_ref[...] * inv_x) * inv_y.T).astype(o_ref.dtype)


def similarity(x, y, temp, eps=1e-8, *, tm=None, tn=None, tk=None,
               out_dtype=jnp.float32):
    """cos(x[:, None, :], y[None, :, :], dim=-1) / temp  ->  (M, N)."""
    # Accept the SimCSE-style broadcast form: x (M,1,H), y (1,N,H).
    if x.ndim == 3 and x.shape[1] == 1:
        x = x[:, 0, :]
    if y.ndim == 3 and y.shape[0] == 1:
        y = y[0]
    assert x.ndim == 2 and y.ndim == 2 and x.shape[-1] == y.shape[-1]
    if x.dtype != y.dtype:
        ct = jnp.result_type(x.dtype, y.dtype)
        x, y = x.astype(ct), y.astype(ct)

    M, H = x.shape
    N, _ = y.shape

    # Tile selection: sublane/lane aligned, minimal padding for small inputs,
    # bounded per-step VMEM footprint for large ones.
    if tm is None:
        m8 = _round_up(M, 8)
        tm = m8 if m8 <= 512 else 256
    if tn is None:
        n128 = _round_up(N, 128)
        tn = n128 if n128 <= 512 else 256
    if tk is None:
        h128 = _round_up(H, 128)
        tk = h128 if h128 <= 2048 else 2048
    assert tm % 8 == 0 and tn % 128 == 0 and tk % 128 == 0

    M_pad = _round_up(M, tm)
    N_pad = _round_up(N, tn)
    H_pad = _round_up(H, tk)

    if (M_pad, H_pad) != (M, H):
        x = jnp.pad(x, ((0, M_pad - M), (0, H_pad - H)))
    if (N_pad, H_pad) != (N, H):
        y = jnp.pad(y, ((0, N_pad - N), (0, H_pad - H)))

    grid = (M_pad // tm, N_pad // tn, H_pad // tk)

    # Per-step VMEM: double-buffered x/y/out tiles + f32 scratch (acc, norms).
    oi = jnp.dtype(out_dtype).itemsize
    step_bytes = (2 * tm * tk * x.dtype.itemsize
                  + 2 * tn * tk * y.dtype.itemsize
                  + 2 * tm * tn * oi
                  + tm * tn * 4 + (tm + tn) * 128 * 4)
    vmem_limit = int(min(max(2 * step_bytes, 32 * 1024 * 1024),
                         48 * 1024 * 1024))

    cost = pl.CostEstimate(
        flops=int(2 * M_pad * N_pad * H_pad + 3 * (M_pad + N_pad) * H_pad),
        transcendentals=int((M_pad + N_pad)),
        bytes_accessed=int(M_pad * H_pad * x.dtype.itemsize * grid[1]
                           + N_pad * H_pad * y.dtype.itemsize * grid[0]
                           + M_pad * N_pad * oi),
    )

    kernel = functools.partial(_similarity_kernel,
                               inv_temp=1.0 / float(temp), eps=float(eps))
    out = pl.pallas_call(
        kernel,
        out_shape=jax.ShapeDtypeStruct((M_pad, N_pad), out_dtype),
        grid=grid,
        in_specs=[
            pl.BlockSpec((tm, tk), lambda i, j, k: (i, k)),
            pl.BlockSpec((tn, tk), lambda i, j, k: (j, k)),
        ],
        out_specs=pl.BlockSpec((tm, tn), lambda i, j, k: (i, j)),
        scratch_shapes=[
            pltpu.VMEM((tm, tn), jnp.float32),   # dot accumulator
            pltpu.VMEM((tm, 1), jnp.float32),    # sum(x^2) accumulator
            pltpu.VMEM((tn, 1), jnp.float32),    # sum(y^2) accumulator
        ],
        compiler_params=pltpu.CompilerParams(
            dimension_semantics=("parallel", "parallel", "arbitrary"),
            vmem_limit_bytes=vmem_limit,
        ),
        cost_estimate=cost,
    )(x, y)

    return out[:M, :N]

# TODO(synk): fully general torch broadcasting (e.g. elementwise row-wise
# cosine of equal-shaped inputs) is not expressed by this all-pairs kernel.


def _reference(x, y, temp, eps=1e-8):
    if x.ndim == 3:
        x = x[:, 0, :]
    if y.ndim == 3:
        y = y[0]
    xn = x / jnp.maximum(jnp.linalg.norm(x, axis=-1, keepdims=True), eps)
    yn = y / jnp.maximum(jnp.linalg.norm(y, axis=-1, keepdims=True), eps)
    return (xn @ yn.T) / temp


if __name__ == "__main__":
    key = jax.random.PRNGKey(0)
    temp = 0.05
    k1, k2, k3, k4, k5, k6 = jax.random.split(key, 6)

    # 1) SimCSE-style usage: sim(z1.unsqueeze(1), z2.unsqueeze(0)) -> (B, B).
    B, H = 8, 32
    z1 = jax.random.normal(k1, (B, H), dtype=jnp.float32)
    z2 = jax.random.normal(k2, (B, H), dtype=jnp.float32)
    out = jax.block_until_ready(similarity(z1[:, None, :], z2[None, :, :], temp))
    ref = _reference(z1, z2, temp)
    assert out.shape == (B, B)
    assert jnp.allclose(out, ref, atol=1e-2, rtol=1e-3)

    # 2) Non-aligned shapes exercising the padding path (single-tile grid).
    M, N, H2 = 272, 200, 96
    x2 = jax.random.normal(k3, (M, H2), dtype=jnp.float32)
    y2 = jax.random.normal(k4, (N, H2), dtype=jnp.float32)
    out2 = jax.block_until_ready(similarity(x2, y2, temp))
    ref2 = _reference(x2, y2, temp)
    assert out2.shape == (M, N)
    assert jnp.allclose(out2, ref2, atol=1e-2, rtol=1e-3)

    # 3) Multi-tile i/j grid plus split contraction axis (k accumulation path).
    M3, N3, H3 = 640, 384, 256
    x3 = jax.random.normal(k5, (M3, H3), dtype=jnp.float32)
    y3 = jax.random.normal(k6, (N3, H3), dtype=jnp.float32)
    out3 = jax.block_until_ready(similarity(x3, y3, temp, tm=256, tn=128, tk=128))
    ref3 = _reference(x3, y3, temp)
    assert out3.shape == (M3, N3)
    assert jnp.allclose(out3, ref3, atol=1e-2, rtol=1e-3)

    print("KERNEL_OK")
</pallas_src>

<mosaic_0001>
module attributes {stable_mosaic.version = 11 : i64} {
  func.func @_similarity_kernel(%arg0: i32, %arg1: i32, %arg2: i32, %arg3: memref<8x128xf32, #tpu.memory_space<vmem>>, %arg4: memref<128x128xf32, #tpu.memory_space<vmem>>, %arg5: memref<8x128xf32, #tpu.memory_space<vmem>>, %arg6: memref<8x128xf32, #tpu.memory_space<vmem>>, %arg7: memref<8x1xf32, #tpu.memory_space<vmem>>, %arg8: memref<128x1xf32, #tpu.memory_space<vmem>>) attributes {dimension_semantics = [#tpu.dimension_semantics<parallel>, #tpu.dimension_semantics<parallel>, #tpu.dimension_semantics<arbitrary>], iteration_bounds = array<i64: 1, 1, 1>, scalar_prefetch = 0 : i64, scratch_operands = 3 : i64, tpu.core_type = #tpu.core_type<tc>, window_params = [{transform_indices = @transform_0, window_bounds = array<i64: 8, 128>}, {transform_indices = @transform_1, window_bounds = array<i64: 128, 128>}, {transform_indices = @transform_2, window_bounds = array<i64: 8, 128>}]} {
    %c0_i32 = arith.constant 0 : i32
    %0 = arith.cmpi eq, %arg2, %c0_i32 : i32
    %1 = arith.extui %0 : i1 to i32
    %c0_i32_0 = arith.constant 0 : i32
    %2 = arith.cmpi ne, %1, %c0_i32_0 : i32
    scf.if %2 {
      %cst_20 = arith.constant 0.000000e+00 : f32
      %24 = vector.broadcast %cst_20 : f32 to vector<8x128xf32>
      %c0_21 = arith.constant 0 : index
      %c0_22 = arith.constant 0 : index
      %25 = vector.load %arg6[%c0_21, %c0_22] : memref<8x128xf32, #tpu.memory_space<vmem>>, vector<8x128xf32>
      tpu.vector_store %arg6[%c0_21, %c0_22], %24 {strides = array<i32>} : memref<8x128xf32, #tpu.memory_space<vmem>>, vector<8x128xf32>,
      %cst_23 = arith.constant 0.000000e+00 : f32
      %26 = vector.broadcast %cst_23 : f32 to vector<8x1xf32>
      %c0_24 = arith.constant 0 : index
      %c0_25 = arith.constant 0 : index
      %27 = vector.load %arg7[%c0_24, %c0_25] : memref<8x1xf32, #tpu.memory_space<vmem>>, vector<8x1xf32>
      tpu.vector_store %arg7[%c0_24, %c0_25], %26 {strides = array<i32>} : memref<8x1xf32, #tpu.memory_space<vmem>>, vector<8x1xf32>,
      %cst_26 = arith.constant 0.000000e+00 : f32
      %28 = vector.broadcast %cst_26 : f32 to vector<128x1xf32>
      %c0_27 = arith.constant 0 : index
      %c0_28 = arith.constant 0 : index
      %29 = vector.load %arg8[%c0_27, %c0_28] : memref<128x1xf32, #tpu.memory_space<vmem>>, vector<128x1xf32>
      tpu.vector_store %arg8[%c0_27, %c0_28], %28 {strides = array<i32>} : memref<128x1xf32, #tpu.memory_space<vmem>>, vector<128x1xf32>,
    } else {
    }
    %c0 = arith.constant 0 : index
    %c0_1 = arith.constant 0 : index
    %3 = vector.load %arg3[%c0, %c0_1] : memref<8x128xf32, #tpu.memory_space<vmem>>, vector<8x128xf32>
    %c0_2 = arith.constant 0 : index
    %c0_3 = arith.constant 0 : index
    %4 = vector.load %arg4[%c0_2, %c0_3] : memref<128x128xf32, #tpu.memory_space<vmem>>, vector<128x128xf32>
    %c0_4 = arith.constant 0 : index
    %c0_5 = arith.constant 0 : index
    %5 = vector.load %arg7[%c0_4, %c0_5] : memref<8x1xf32, #tpu.memory_space<vmem>>, vector<8x1xf32>
    %6 = arith.mulf %3, %3 : vector<8x128xf32>
    %cst = arith.constant dense<0.000000e+00> : vector<8xf32>
    %7 = vector.multi_reduction <add>, %6, %cst [1] : vector<8x128xf32> to vector<8xf32>
    %8 = vector.shape_cast %7 : vector<8xf32> to vector<8x1xf32>
    %9 = arith.addf %5, %8 : vector<8x1xf32>
    %c0_6 = arith.constant 0 : index
    %c0_7 = arith.constant 0 : index
    %10 = vector.load %arg7[%c0_6, %c0_7] : memref<8x1xf32, #tpu.memory_space<vmem>>, vector<8x1xf32>
    tpu.vector_store %arg7[%c0_6, %c0_7], %9 {strides = array<i32>} : memref<8x1xf32, #tpu.memory_space<vmem>>, vector<8x1xf32>,
    %c0_8 = arith.constant 0 : index
    %c0_9 = arith.constant 0 : index
    %11 = vector.load %arg8[%c0_8, %c0_9] : memref<128x1xf32, #tpu.memory_space<vmem>>, vector<128x1xf32>
    %12 = arith.mulf %4, %4 : vector<128x128xf32>
    %cst_10 = arith.constant dense<0.000000e+00> : vector<128xf32>
    %13 = vector.multi_reduction <add>, %12, %cst_10 [1] : vector<128x128xf32> to vector<128xf32>
    %14 = vector.shape_cast %13 : vector<128xf32> to vector<128x1xf32>
    %15 = arith.addf %11, %14 : vector<128x1xf32>
    %c0_11 = arith.constant 0 : index
    %c0_12 = arith.constant 0 : index
    %16 = vector.load %arg8[%c0_11, %c0_12] : memref<128x1xf32, #tpu.memory_space<vmem>>, vector<128x1xf32>
    tpu.vector_store %arg8[%c0_11, %c0_12], %15 {strides = array<i32>} : memref<128x1xf32, #tpu.memory_space<vmem>>, vector<128x1xf32>,
    %c0_13 = arith.constant 0 : index
    %c0_14 = arith.constant 0 : index
    %17 = vector.load %arg6[%c0_13, %c0_14] : memref<8x128xf32, #tpu.memory_space<vmem>>, vector<8x128xf32>
    %cst_15 = arith.constant dense<0.000000e+00> : vector<8x128xf32>
    %18 = tpu.matmul %3, %4, %cst_15 {dimension_numbers = #tpu.dot_dimension_numbers<[1], [1], [0], [0], [0, 0, 1, 0], [], []>} : vector<8x128xf32>, vector<128x128xf32>, vector<8x128xf32> -> vector<8x128xf32>
    %19 = arith.addf %17, %18 : vector<8x128xf32>
    %c0_16 = arith.constant 0 : index
    %c0_17 = arith.constant 0 : index
    %20 = vector.load %arg6[%c0_16, %c0_17] : memref<8x128xf32, #tpu.memory_space<vmem>>, vector<8x128xf32>
    tpu.vector_store %arg6[%c0_16, %c0_17], %19 {strides = array<i32>} : memref<8x128xf32, #tpu.memory_space<vmem>>, vector<8x128xf32>,
    %c0_i32_18 = arith.constant 0 : i32
    %21 = arith.cmpi eq, %arg2, %c0_i32_18 : i32
    %22 = arith.extui %21 : i1 to i32
    %c0_i32_19 = arith.constant 0 : i32
    %23 = arith.cmpi ne, %22, %c0_i32_19 : i32
    scf.if %23 {
      %c0_20 = arith.constant 0 : index
      %c0_21 = arith.constant 0 : index
      %24 = vector.load %arg7[%c0_20, %c0_21] : memref<8x1xf32, #tpu.memory_space<vmem>>, vector<8x1xf32>
      %cst_22 = arith.constant 1.000000e-16 : f32
      %25 = vector.broadcast %cst_22 : f32 to vector<8x1xf32>
      %26 = arith.maximumf %24, %25 : vector<8x1xf32>
      %27 = math.rsqrt %26 : vector<8x1xf32>
      %cst_23 = arith.constant 2.000000e+01 : f32
      %28 = vector.broadcast %cst_23 : f32 to vector<8x1xf32>
      %29 = arith.mulf %27, %28 : vector<8x1xf32>
      %c0_24 = arith.constant 0 : index
      %c0_25 = arith.constant 0 : index
      %30 = vector.load %arg8[%c0_24, %c0_25] : memref<128x1xf32, #tpu.memory_space<vmem>>, vector<128x1xf32>
      %cst_26 = arith.constant 1.000000e-16 : f32
      %31 = vector.broadcast %cst_26 : f32 to vector<128x1xf32>
      %32 = arith.maximumf %30, %31 : vector<128x1xf32>
      %33 = math.rsqrt %32 : vector<128x1xf32>
      %c0_27 = arith.constant 0 : index
      %c0_28 = arith.constant 0 : index
      %34 = vector.load %arg6[%c0_27, %c0_28] : memref<8x128xf32, #tpu.memory_space<vmem>>, vector<8x128xf32>
      %35 = vector.broadcast %29 : vector<8x1xf32> to vector<8x128xf32>
      %36 = arith.mulf %34, %35 : vector<8x128xf32>
      %37 = tpu.transpose %33, [1, 0] : vector<128x1xf32> -> vector<1x128xf32>
      %38 = vector.broadcast %37 : vector<1x128xf32> to vector<8x128xf32>
      %39 = arith.mulf %36, %38 : vector<8x128xf32>
      %c0_29 = arith.constant 0 : index
      %c0_30 = arith.constant 0 : index
      %40 = vector.load %arg5[%c0_29, %c0_30] : memref<8x128xf32, #tpu.memory_space<vmem>>, vector<8x128xf32>
      tpu.vector_store %arg5[%c0_29, %c0_30], %39 {strides = array<i32>} : memref<8x128xf32, #tpu.memory_space<vmem>>, vector<8x128xf32>,
    } else {
    }
    return
  }
  func.func @transform_0(%arg0: i32, %arg1: i32, %arg2: i32) -> (i32, i32) {
    %c0_i32 = arith.constant 0 : i32
    return %arg0, %arg2 : i32, i32
  }
  func.func @transform_1(%arg0: i32, %arg1: i32, %arg2: i32) -> (i32, i32) {
    %c0_i32 = arith.constant 0 : i32
    return %arg1, %arg2 : i32, i32
  }
  func.func @transform_2(%arg0: i32, %arg1: i32, %arg2: i32) -> (i32, i32) {
    %c0_i32 = arith.constant 0 : i32
    return %arg0, %arg1 : i32, i32
  }
}

</mosaic_0001>

<llo_original>
// kernel: tpu_custom_call.1
$region0: #{tpu_custom_call.1}
  #allocation0 [shape = 'u32[]', space=smem, size = 0x4, offset = 0x4, fixed_abs, tag = 'smem constant byte address 0x4 - core index']
  #allocation1 [shape = 'u32[144,128]{1,0:T(1,128)}', space=vmem, size = 0x12000, scoped, tag = 'internal scratch']
  #allocation2 [shape = 'f32[8,128]{1,0:T(8,128)}', space=vmem, size = 0x1000, scoped, tag = 'scratch operand']
  #allocation3 [shape = 'f32[8,1]{1,0:T(8,128)}', space=vmem, size = 0x1000, scoped, tag = 'scratch operand']
  #allocation4 [shape = 'f32[128,1]{1,0:T(8,128)}', space=vmem, size = 0x10000, scoped, tag = 'scratch operand']
  %s0 = inlined_call_operand.hbm [shape: f32[8,128], index: 0, kind: input, shape index: {}]
  %s1 = inlined_call_operand.hbm [shape: f32[128,128], index: 1, kind: input, shape index: {}]
  %s2 = inlined_call_operand.hbm [shape: f32[8,128], index: 2, kind: output, shape index: {}]
  %s3 = sld [smem:[#allocation0]]
  $region34: #{tpu_custom_call.1} parent=0
    _
  %s5 = ssub.s32 1, %s3
  %s6 = scalar_select 0, %s5, %s3
  $region1: #{tpu_custom_call.1} parent=0
    #allocation5 [shape = 'u8[4096]{0}', space=vmem, size = 0x1000, scoped, tag = 'input window, operand 0, single buffered']
    #allocation6 [shape = 's32[1]{0}', space=sflag, size = 0x4, scoped, tag = 'scoped memory for tpu_custom_call.1']
    #allocation7 [shape = 's32[1]{0}', space=sflag, size = 0x4, scoped, tag = 'scoped memory for tpu_custom_call.1']
    #allocation8 [shape = 'u8[65536]{0}', space=vmem, size = 0x10000, scoped, tag = 'input window, operand 1, single buffered']
    #allocation9 [shape = 's32[1]{0}', space=sflag, size = 0x4, scoped, tag = 'scoped memory for tpu_custom_call.1']
    #allocation10 [shape = 'u8[4096]{0}', space=vmem, size = 0x1000, scoped, tag = 'output window, operand 0, single buffered']
    %7 = vsyncpa [#allocation6], 0
    %8 = vsyncpa [#allocation9], 0
    %9 = vsyncpa [#allocation7], 0
    // Predicated region
    $region2: #{tpu_custom_call.1} parent=1 // pred_check
      _
    $region3: #{tpu_custom_call.1} parent=1 // pred_check_branch
      %11 = sbr.rel (0) target = $region5
    $region4: #{tpu_custom_call.1} parent=1 // pred_region
      %s13 = ssub.s32 128, 128
      %14 = vsyncadd [#allocation6], %s13
      %s16 = sshll.u32 [#allocation5], 4
      %s17 = int_to_ptr.vmem [resolvable:$true] %s16
      %19 = dma.hbm_to_vmem [thread:$0]  %s0, 128, %s17, [#allocation6]
    $region5: #{tpu_custom_call.1} parent=1 // pred_fallthru
      _
    // Predicated region
    $region6: #{tpu_custom_call.1} parent=1 // pred_check
      _
    $region7: #{tpu_custom_call.1} parent=1 // pred_check_branch
      %21 = sbr.rel (0) target = $region9
    $region8: #{tpu_custom_call.1} parent=1 // pred_region
      %s23 = ssub.s32 2048, 2048
      %24 = vsyncadd [#allocation9], %s23
      %s25 = sshll.u32 [#allocation8], 4
      %s26 = int_to_ptr.vmem [resolvable:$true] %s25
      %31 = dma.hbm_to_vmem [thread:$0]  %s1, 2048, %s26, [#allocation9], 128, 128, 8
    $region9: #{tpu_custom_call.1} parent=1 // pred_fallthru
      _
    // Predicated region
    $region10: #{tpu_custom_call.1} parent=1 // pred_check
      _
    $region11: #{tpu_custom_call.1} parent=1 // pred_check_branch
      %33 = sbr.rel (0) target = $region13
    $region12: #{tpu_custom_call.1} parent=1 // pred_region
      %34 = dma.done [#allocation6], 128
    $region13: #{tpu_custom_call.1} parent=1 // pred_fallthru
      _
    // Predicated region
    $region14: #{tpu_custom_call.1} parent=1 // pred_check
      _
    $region15: #{tpu_custom_call.1} parent=1 // pred_check_branch
      %36 = sbr.rel (0) target = $region17
    $region16: #{tpu_custom_call.1} parent=1 // pred_region
      %37 = dma.done [#allocation9], 2048
    $region17: #{tpu_custom_call.1} parent=1 // pred_fallthru
      _
    %p38 = scmp.eq.s32.totalorder 0, 0
    // Predicated region
    $region18: #{tpu_custom_call.1} parent=1 // pred_check
      %p39 = pneg %p38
    $region19: #{tpu_custom_call.1} parent=1 // pred_check_branch
      %41 = sbr.rel (%p39) target = $region21
    $region20: #{tpu_custom_call.1} parent=1 // pred_region
      %42 = vst [vmem:[#allocation2] sm:$0xff] 0.0
      %vm43 = vcmask 7168
      %44 = vst.msk [vmem:[#allocation3] sm:$0xff] %vm43, 0.0
      %45 = vst.msk [vmem:[#allocation4] sm:$0xff] %vm43, 0.0
      %46 = vst.msk [vmem:[#allocation4 + $0x8] sm:$0xff] %vm43, 0.0
      %47 = vst.msk [vmem:[#allocation4 + $0x10] sm:$0xff] %vm43, 0.0
      %48 = vst.msk [vmem:[#allocation4 + $0x18] sm:$0xff] %vm43, 0.0
      %49 = vst.msk [vmem:[#allocation4 + $0x20] sm:$0xff] %vm43, 0.0
      %50 = vst.msk [vmem:[#allocation4 + $0x28] sm:$0xff] %vm43, 0.0
      %51 = vst.msk [vmem:[#allocation4 + $0x30] sm:$0xff] %vm43, 0.0
      %52 = vst.msk [vmem:[#allocation4 + $0x38] sm:$0xff] %vm43, 0.0
      %53 = vst.msk [vmem:[#allocation4 + $0x40] sm:$0xff] %vm43, 0.0
      %54 = vst.msk [vmem:[#allocation4 + $0x48] sm:$0xff] %vm43, 0.0
      %55 = vst.msk [vmem:[#allocation4 + $0x50] sm:$0xff] %vm43, 0.0
      %56 = vst.msk [vmem:[#allocation4 + $0x58] sm:$0xff] %vm43, 0.0
      %57 = vst.msk [vmem:[#allocation4 + $0x60] sm:$0xff] %vm43, 0.0
      %58 = vst.msk [vmem:[#allocation4 + $0x68] sm:$0xff] %vm43, 0.0
      %59 = vst.msk [vmem:[#allocation4 + $0x70] sm:$0xff] %vm43, 0.0
      %60 = vst.msk [vmem:[#allocation4 + $0x78] sm:$0xff] %vm43, 0.0
    $region21: #{tpu_custom_call.1} parent=1 // pred_fallthru
      _
    %v61 = vld [vmem:[#allocation5] sm:$0xff]
    %v62 = vld [vmem:[#allocation8] sm:$0xff]
    %v63 = vld [vmem:[#allocation8 + $0x8] sm:$0xff]
    %v64 = vld [vmem:[#allocation8 + $0x10] sm:$0xff]
    %v65 = vld [vmem:[#allocation8 + $0x18] sm:$0xff]
    %v66 = vld [vmem:[#allocation8 + $0x20] sm:$0xff]
    %v67 = vld [vmem:[#allocation8 + $0x28] sm:$0xff]
    %v68 = vld [vmem:[#allocation8 + $0x30] sm:$0xff]
    %v69 = vld [vmem:[#allocation8 + $0x38] sm:$0xff]
    %v70 = vld [vmem:[#allocation8 + $0x40] sm:$0xff]
    %v71 = vld [vmem:[#allocation8 + $0x48] sm:$0xff]
    %v72 = vld [vmem:[#allocation8 + $0x50] sm:$0xff]
    %v73 = vld [vmem:[#allocation8 + $0x58] sm:$0xff]
    %v74 = vld [vmem:[#allocation8 + $0x60] sm:$0xff]
    %v75 = vld [vmem:[#allocation8 + $0x68] sm:$0xff]
    %v76 = vld [vmem:[#allocation8 + $0x70] sm:$0xff]
    %v77 = vld [vmem:[#allocation8 + $0x78] sm:$0xff]
    %v78 = vld [vmem:[#allocation3] sm:$0xff]
    %v79 = vmul.f32 %v61, %v61
    %80 = vadd.xlane.f32.xlu0 %v79
    %v81 = vpop.xlane.xlu0 %80
    %v82 = vadd.f32 %v78, %v81
    %vm83 = vcmask 7168
    %84 = vst.msk [vmem:[#allocation3] sm:$0xff] %vm83, %v82
    %v85 = vld [vmem:[#allocation4] sm:$0xff]
    %v86 = vld [vmem:[#allocation4 + $0x8] sm:$0xff]
    %v87 = vld [vmem:[#allocation4 + $0x10] sm:$0xff]
    %v88 = vld [vmem:[#allocation4 + $0x18] sm:$0xff]
    %v89 = vld [vmem:[#allocation4 + $0x20] sm:$0xff]
    %v90 = vld [vmem:[#allocation4 + $0x28] sm:$0xff]
    %v91 = vld [vmem:[#allocation4 + $0x30] sm:$0xff]
    %v92 = vld [vmem:[#allocation4 + $0x38] sm:$0xff]
    %v93 = vld [vmem:[#allocation4 + $0x40] sm:$0xff]
    %v94 = vld [vmem:[#allocation4 + $0x48] sm:$0xff]
    %v95 = vld [vmem:[#allocation4 + $0x50] sm:$0xff]
    %v96 = vld [vmem:[#allocation4 + $0x58] sm:$0xff]
    %v97 = vld [vmem:[#allocation4 + $0x60] sm:$0xff]
    %v98 = vld [vmem:[#allocation4 + $0x68] sm:$0xff]
    %v99 = vld [vmem:[#allocation4 + $0x70] sm:$0xff]
    %v100 = vld [vmem:[#allocation4 + $0x78] sm:$0xff]
    %v101 = vmul.f32 %v62, %v62
    %v102 = vmul.f32 %v63, %v63
    %v103 = vmul.f32 %v64, %v64
    %v104 = vmul.f32 %v65, %v65
    %v105 = vmul.f32 %v66, %v66
    %v106 = vmul.f32 %v67, %v67
    %v107 = vmul.f32 %v68, %v68
    %v108 = vmul.f32 %v69, %v69
    %v109 = vmul.f32 %v70, %v70
    %v110 = vmul.f32 %v71, %v71
    %v111 = vmul.f32 %v72, %v72
    %v112 = vmul.f32 %v73, %v73
    %v113 = vmul.f32 %v74, %v74
    %v114 = vmul.f32 %v75, %v75
    %v115 = vmul.f32 %v76, %v76
    %v116 = vmul.f32 %v77, %v77
    %117 = vadd.xlane.f32.xlu0 %v101
    %v118 = vpop.xlane.xlu0 %117
    %119 = vadd.xlane.f32.xlu0 %v102
    %v120 = vpop.xlane.xlu0 %119
    %121 = vadd.xlane.f32.xlu0 %v103
    %v122 = vpop.xlane.xlu0 %121
    %123 = vadd.xlane.f32.xlu0 %v104
    %v124 = vpop.xlane.xlu0 %123
    %125 = vadd.xlane.f32.xlu0 %v105
    %v126 = vpop.xlane.xlu0 %125
    %127 = vadd.xlane.f32.xlu0 %v106
    %v128 = vpop.xlane.xlu0 %127
    %129 = vadd.xlane.f32.xlu0 %v107
    %v130 = vpop.xlane.xlu0 %129
    %131 = vadd.xlane.f32.xlu0 %v108
    %v132 = vpop.xlane.xlu0 %131
    %133 = vadd.xlane.f32.xlu0 %v109
    %v134 = vpop.xlane.xlu0 %133
    %135 = vadd.xlane.f32.xlu0 %v110
    %v136 = vpop.xlane.xlu0 %135
    %137 = vadd.xlane.f32.xlu0 %v111
    %v138 = vpop.xlane.xlu0 %137
    %139 = vadd.xlane.f32.xlu0 %v112
    %v140 = vpop.xlane.xlu0 %139
    %141 = vadd.xlane.f32.xlu0 %v113
    %v142 = vpop.xlane.xlu0 %141
    %143 = vadd.xlane.f32.xlu0 %v114
    %v144 = vpop.xlane.xlu0 %143
    %145 = vadd.xlane.f32.xlu0 %v115
    %v146 = vpop.xlane.xlu0 %145
    %147 = vadd.xlane.f32.xlu0 %v116
    %v148 = vpop.xlane.xlu0 %147
    %v149 = vadd.f32 %v85, %v118
    %v150 = vadd.f32 %v86, %v120
    %v151 = vadd.f32 %v87, %v122
    %v152 = vadd.f32 %v88, %v124
    %v153 = vadd.f32 %v89, %v126
    %v154 = vadd.f32 %v90, %v128
    %v155 = vadd.f32 %v91, %v130
    %v156 = vadd.f32 %v92, %v132
    %v157 = vadd.f32 %v93, %v134
    %v158 = vadd.f32 %v94, %v136
    %v159 = vadd.f32 %v95, %v138
    %v160 = vadd.f32 %v96, %v140
    %v161 = vadd.f32 %v97, %v142
    %v162 = vadd.f32 %v98, %v144
    %v163 = vadd.f32 %v99, %v146
    %v164 = vadd.f32 %v100, %v148
    %165 = vst.msk [vmem:[#allocation4] sm:$0xff] %vm83, %v149
    %166 = vst.msk [vmem:[#allocation4 + $0x8] sm:$0xff] %vm83, %v150
    %167 = vst.msk [vmem:[#allocation4 + $0x10] sm:$0xff] %vm83, %v151
    %168 = vst.msk [vmem:[#allocation4 + $0x18] sm:$0xff] %vm83, %v152
    %169 = vst.msk [vmem:[#allocation4 + $0x20] sm:$0xff] %vm83, %v153
    %170 = vst.msk [vmem:[#allocation4 + $0x28] sm:$0xff] %vm83, %v154
    %171 = vst.msk [vmem:[#allocation4 + $0x30] sm:$0xff] %vm83, %v155
    %172 = vst.msk [vmem:[#allocation4 + $0x38] sm:$0xff] %vm83, %v156
    %173 = vst.msk [vmem:[#allocation4 + $0x40] sm:$0xff] %vm83, %v157
    %174 = vst.msk [vmem:[#allocation4 + $0x48] sm:$0xff] %vm83, %v158
    %175 = vst.msk [vmem:[#allocation4 + $0x50] sm:$0xff] %vm83, %v159
    %176 = vst.msk [vmem:[#allocation4 + $0x58] sm:$0xff] %vm83, %v160
    %177 = vst.msk [vmem:[#allocation4 + $0x60] sm:$0xff] %vm83, %v161
    %178 = vst.msk [vmem:[#allocation4 + $0x68] sm:$0xff] %vm83, %v162
    %179 = vst.msk [vmem:[#allocation4 + $0x70] sm:$0xff] %vm83, %v163
    %180 = vst.msk [vmem:[#allocation4 + $0x78] sm:$0xff] %vm83, %v164
    %v181 = vld [vmem:[#allocation2] sm:$0xff]
    %182 = vmatprep.subr.mxu0 0.0
    %183 = vmatpush1.xpose.msra.mxu0 %v62
    %184 = vmatprep.subr.mxu0 0.0
    %185 = vmatpush1.xpose.msra.mxu0 %v63
    %186 = vmatprep.subr.mxu0 0.0
    %187 = vmatpush1.xpose.msra.mxu0 %v64
    %188 = vmatprep.subr.mxu0 0.0
    %189 = vmatpush1.xpose.msra.mxu0 %v65
    %190 = vmatprep.subr.mxu0 0.0
    %191 = vmatpush1.xpose.msra.mxu0 %v66
    %192 = vmatprep.subr.mxu0 0.0
    %193 = vmatpush1.xpose.msra.mxu0 %v67
    %194 = vmatprep.subr.mxu0 0.0
    %195 = vmatpush1.xpose.msra.mxu0 %v68
    %196 = vmatprep.subr.mxu0 0.0
    %197 = vmatpush1.xpose.msra.mxu0 %v69
    %198 = vmatprep.subr.mxu0 0.0
    %199 = vmatpush1.xpose.msra.mxu0 %v70
    %200 = vmatprep.subr.mxu0 0.0
    %201 = vmatpush1.xpose.msra.mxu0 %v71
    %202 = vmatprep.subr.mxu0 0.0
    %203 = vmatpush1.xpose.msra.mxu0 %v72
    %204 = vmatprep.subr.mxu0 0.0
    %205 = vmatpush1.xpose.msra.mxu0 %v73
    %206 = vmatprep.subr.mxu0 0.0
    %207 = vmatpush1.xpose.msra.mxu0 %v74
    %208 = vmatprep.subr.mxu0 0.0
    %209 = vmatpush1.xpose.msra.mxu0 %v75
    %210 = vmatprep.subr.mxu0 0.0
    %211 = vmatpush1.xpose.msra.mxu0 %v76
    %212 = vmatprep.subr.mxu0 0.0
    %213 = vmatpush1.xpose.msra.mxu0 %v77
    %214 = vmatprep.subr.mxu0 0.0
    %215 = vmatpush1.xpose.msra.mxu0 0.0
    %216 = vmatprep.subr.mxu0 0.0
    %217 = vmatpush1.xpose.msra.mxu0 0.0
    %218 = vmatprep.subr.mxu0 0.0
    %219 = vmatpush1.xpose.msra.mxu0 0.0
    %220 = vmatprep.subr.mxu0 0.0
    %221 = vmatpush1.xpose.msra.mxu0 0.0
    %222 = vmatprep.subr.mxu0 0.0
    %223 = vmatpush1.xpose.msra.mxu0 0.0
    %224 = vmatprep.subr.mxu0 0.0
    %225 = vmatpush1.xpose.msra.mxu0 0.0
    %226 = vmatprep.subr.mxu0 0.0
    %227 = vmatpush1.xpose.msra.mxu0 0.0
    %228 = vmatprep.subr.mxu0 0.0
    %229 = vmatpush1.xpose.msra.mxu0 0.0
    %230 = vmatprep.subr.mxu0 0.0
    %231 = vmatpush1.xpose.msra.mxu0 0.0
    %232 = vmatprep.subr.mxu0 0.0
    %233 = vmatpush1.xpose.msra.mxu0 0.0
    %234 = vmatprep.subr.mxu0 0.0
    %235 = vmatpush1.xpose.msra.mxu0 0.0
    %236 = vmatprep.subr.mxu0 0.0
    %237 = vmatpush1.xpose.msra.mxu0 0.0
    %238 = vmatprep.subr.mxu0 0.0
    %239 = vmatpush1.xpose.msra.mxu0 0.0
    %240 = vmatprep.subr.mxu0 0.0
    %241 = vmatpush1.xpose.msra.mxu0 0.0
    %242 = vmatprep.subr.mxu0 0.0
    %243 = vmatpush1.xpose.msra.mxu0 0.0
    %244 = vmatprep.subr.mxu0 0.0
    %245 = vmatpush1.xpose.msra.mxu0 0.0
    %246 = vmatprep.mubr.f32.mxu0 0.0
    %247 = vmatmul.mubr.f32.gmra.mrb[0].mxu0 %v61
    %v248 = vpop.f32.mrb[0].mxu0
    %v249 = vadd.f32 0.0, %v248
    %v250 = vpop.f32.mrb[0].mxu0
    %251 = vdwg.mxu0
    %v252 = vadd.f32 %v181, %v249
    %253 = vst [vmem:[#allocation2] sm:$0xff] %v252
    // Predicated region
    $region22: #{tpu_custom_call.1} parent=1 // pred_check
      %p254 = pneg %p38
    $region23: #{tpu_custom_call.1} parent=1 // pred_check_branch
      %256 = sbr.rel (%p254) target = $region25
    $region24: #{tpu_custom_call.1} parent=1 // pred_region
      %v257 = vld [vmem:[#allocation3] sm:$0xff]
      %v258 = vmax.f32 %v257, 1e-16
      %v259 = vrsqrt.pop %v258
      %v260 = vmul.f32 %v259, 20.0
      %v261 = vld [vmem:[#allocation4] sm:$0xff]
      %v262 = vld [vmem:[#allocation4 + $0x8] sm:$0xff]
      %v263 = vld [vmem:[#allocation4 + $0x10] sm:$0xff]
      %v264 = vld [vmem:[#allocation4 + $0x18] sm:$0xff]
      %v265 = vld [vmem:[#allocation4 + $0x20] sm:$0xff]
      %v266 = vld [vmem:[#allocation4 + $0x28] sm:$0xff]
      %v267 = vld [vmem:[#allocation4 + $0x30] sm:$0xff]
      %v268 = vld [vmem:[#allocation4 + $0x38] sm:$0xff]
      %v269 = vld [vmem:[#allocation4 + $0x40] sm:$0xff]
      %v270 = vld [vmem:[#allocation4 + $0x48] sm:$0xff]
      %v271 = vld [vmem:[#allocation4 + $0x50] sm:$0xff]
      %v272 = vld [vmem:[#allocation4 + $0x58] sm:$0xff]
      %v273 = vld [vmem:[#allocation4 + $0x60] sm:$0xff]
      %v274 = vld [vmem:[#allocation4 + $0x68] sm:$0xff]
      %v275 = vld [vmem:[#allocation4 + $0x70] sm:$0xff]
      %v276 = vld [vmem:[#allocation4 + $0x78] sm:$0xff]
      %v277 = vmax.f32 %v261, 1e-16
      %v278 = vmax.f32 %v262, 1e-16
      %v279 = vmax.f32 %v263, 1e-16
      %v280 = vmax.f32 %v264, 1e-16
      %v281 = vmax.f32 %v265, 1e-16
      %v282 = vmax.f32 %v266, 1e-16
      %v283 = vmax.f32 %v267, 1e-16
      %v284 = vmax.f32 %v268, 1e-16
      %v285 = vmax.f32 %v269, 1e-16
      %v286 = vmax.f32 %v270, 1e-16
      %v287 = vmax.f32 %v271, 1e-16
      %v288 = vmax.f32 %v272, 1e-16
      %v289 = vmax.f32 %v273, 1e-16
      %v290 = vmax.f32 %v274, 1e-16
      %v291 = vmax.f32 %v275, 1e-16
      %v292 = vmax.f32 %v276, 1e-16
      %v293 = vrsqrt.pop %v277
      %v294 = vrsqrt.pop %v278
      %v295 = vrsqrt.pop %v279
      %v296 = vrsqrt.pop %v280
      %v297 = vrsqrt.pop %v281
      %v298 = vrsqrt.pop %v282
      %v299 = vrsqrt.pop %v283
      %v300 = vrsqrt.pop %v284
      %v301 = vrsqrt.pop %v285
      %v302 = vrsqrt.pop %v286
      %v303 = vrsqrt.pop %v287
      %v304 = vrsqrt.pop %v288
      %v305 = vrsqrt.pop %v289
      %v306 = vrsqrt.pop %v290
      %v307 = vrsqrt.pop %v291
      %v308 = vrsqrt.pop %v292
      %v309 = vld [vmem:[#allocation2] sm:$0xff]
      %311 = vset.pattern.permute.xlu0 0
      %312 = vperm.xlu0 %311, %v260
      %v313 = vpop.permute.xlu0 %312
      %v315 = vmul.f32 %v309, %v313
      %316 = vxpose.xlu0.b32.start [1/16] %v293, 128
      %317 = vxpose.xlu0.b32.cont [2/16] %v294, 128
      %318 = vxpose.xlu0.b32.cont [3/16] %v295, 128
      %319 = vxpose.xlu0.b32.cont [4/16] %v296, 128
      %320 = vxpose.xlu0.b32.cont [5/16] %v297, 128
      %321 = vxpose.xlu0.b32.cont [6/16] %v298, 128
      %322 = vxpose.xlu0.b32.cont [7/16] %v299, 128
      %323 = vxpose.xlu0.b32.cont [8/16] %v300, 128
      %324 = vxpose.xlu0.b32.cont [9/16] %v301, 128
      %325 = vxpose.xlu0.b32.cont [10/16] %v302, 128
      %326 = vxpose.xlu0.b32.cont [11/16] %v303, 128
      %327 = vxpose.xlu0.b32.cont [12/16] %v304, 128
      %328 = vxpose.xlu0.b32.cont [13/16] %v305, 128
      %329 = vxpose.xlu0.b32.cont [14/16] %v306, 128
      %330 = vxpose.xlu0.b32.cont [15/16] %v307, 128
      %331 = vxpose.xlu0.b32.end [16/16] %v308, 128
      %v332 = vpop.trf.xlu0
      %v333 = vpop.trf.xlu0
      %v334 = vpop.trf.xlu0
      %v335 = vpop.trf.xlu0
      %v336 = vpop.trf.xlu0
      %v337 = vpop.trf.xlu0
      %v338 = vpop.trf.xlu0
      %v339 = vpop.trf.xlu0
      %v340 = vpop.trf.xlu0
      %v341 = vpop.trf.xlu0
      %v342 = vpop.trf.xlu0
      %v343 = vpop.trf.xlu0
      %v344 = vpop.trf.xlu0
      %v345 = vpop.trf.xlu0
      %v346 = vpop.trf.xlu0
      %v347 = vpop.trf.xlu0
      %v348 = vlaneseq
      %v349 = vshrl.u32 %v348, 7
      %v350 = vsub.s32 0, %v349
      %v351 = vrot.slane %v332, %v350
      %v352 = vmul.f32 %v315, %v351
      %353 = vst [vmem:[#allocation10] sm:$0xff] %v352
    $region25: #{tpu_custom_call.1} parent=1 // pred_fallthru
      _
    // Predicated region
    $region26: #{tpu_custom_call.1} parent=1 // pred_check
      _
    $region27: #{tpu_custom_call.1} parent=1 // pred_check_branch
      %355 = sbr.rel (0) target = $region29
    $region28: #{tpu_custom_call.1} parent=1 // pred_region
      %s357 = ssub.s32 128, 128
      %358 = vsyncadd [#allocation7], %s357
      %s360 = sshll.u32 [#allocation10], 4
      %s361 = int_to_ptr.vmem [resolvable:$true] %s360
      %363 = dma.vmem_to_hbm [thread:$0]  %s361, 128, %s2, [#allocation7]
    $region29: #{tpu_custom_call.1} parent=1 // pred_fallthru
      _
    // Predicated region
    $region30: #{tpu_custom_call.1} parent=1 // pred_check
      _
    $region31: #{tpu_custom_call.1} parent=1 // pred_check_branch
      %365 = sbr.rel (0) target = $region33
    $region32: #{tpu_custom_call.1} parent=1 // pred_region
      %366 = dma.done [#allocation7], 128
    $region33: #{tpu_custom_call.1} parent=1 // pred_fallthru
      _
    %367 = vsyncpa [#allocation6], 1
    %368 = vsyncpa [#allocation9], 1
    %369 = vsyncpa [#allocation7], 1

</llo_original>
